<compile_context>
chip_gen: v7x
topology: tpu7x:2x2x1
jax: 0.10.0
libtpu: 0.0.40
codegen_flags: <defaults>
</compile_context>

<pallas_src>
import jax
import jax.numpy as jnp
from jax.experimental import pallas as pl
from jax.experimental.pallas import tpu as pltpu

_LANE = 128
_MAX_TILE_B = 4096


def _head_kernel(xT_ref, w1T_ref, b1_ref, w2d_ref, b2d_ref, o_ref):
    """Fused head, transposed layout (batch on lanes).

    xT_ref : (D, TB)  concat([we, hf], 1)^T tile, bf16, lane-dense
    w1T_ref: (D, D)   W1^T, bf16, VMEM-resident
    b1_ref : (D, 1)   ll1 bias as a column, f32, resident
    w2d_ref: (D, 1)   w2[:,1] - w2[:,0] as a column, f32, resident
    b2d_ref: (1, 1)   b2[1] - b2[0], f32, SMEM scalar
    o_ref  : (2, TB)  [p0 ; p1] softmax probabilities, f32, lane-dense
    """
    # Dropout(p=0.25) is identity at inference.
    # ll1 over the conceptual concat, transposed: hT = W1^T @ xT  (single MXU pass, f32 acc).
    hT = jnp.dot(w1T_ref[...], xT_ref[...], preferred_element_type=jnp.float32)
    hT = jnp.tanh(hT + b1_ref[...])                                        # (D, TB) f32

    # ll2 reduced to the class-1 minus class-0 logit difference; D = 40 is tiny, so this is
    # a VPU multiply + sublane reduce (no MXU drain, h stays f32).
    d = jnp.sum(hT * w2d_ref[...], axis=0, keepdims=True) + b2d_ref[0, 0]  # (1, TB) f32

    # softmax([l0, l1]) == [1 - sigmoid(d), sigmoid(d)]  (exact); one transcendental column.
    p1 = 1.0 / (1.0 + jnp.exp(-d))
    p0 = 1.0 - p1

    # Assemble the (2, TB) block with a sublane-broadcast select -> lane-dense store.
    row = jax.lax.broadcasted_iota(jnp.int32, o_ref.shape, 0)
    o_ref[...] = jnp.where(row == 0, p0, p1).astype(o_ref.dtype)


def _round_up(x: int, m: int) -> int:
    return (x + m - 1) // m * m


def _choose_tiling(B: int):
    """Pick (tile_b, padded_b): lane-aligned, big tiles, minimal padding waste."""
    nblk = pl.cdiv(max(B, 1), _LANE)            # 128-row lane blocks after padding
    if nblk <= 2:
        return nblk * _LANE, nblk * _LANE       # tiny batch: a single grid step
    max_bpt = _MAX_TILE_B // _LANE
    # Largest tile (in 128-row blocks) that divides the lane-padded batch exactly
    # (zero padding waste) while leaving >= 2 grid steps (feeds both v7x TensorCores;
    # on v5e/v6e the extra step costs ~0.35 us, i.e. noise at these sizes).
    bpt = 1
    for cand in range(1, min(max_bpt, nblk // 2) + 1):
        if nblk % cand == 0:
            bpt = cand
    # Awkward (e.g. prime) block counts: trade < 1 tile of padding for far fewer steps.
    if nblk // bpt > 8:
        bpt = min(max_bpt, pl.cdiv(nblk, 2))
    tile_b = bpt * _LANE
    return tile_b, _round_up(nblk * _LANE, tile_b)


def base_model_head(word_embeddings, hate_features, w1, b1, w2, b2):
    """Pallas-backed forward of BaseModel._linear on concat([we, hf], dim=1).

    Weights are (in_features, out_features) — transposed from torch nn.Linear storage.
    """
    B, T = word_embeddings.shape
    H = hate_features.shape[1]
    D = T + H
    assert w1.shape == (D, D) and w2.shape == (D, 2)

    tile_b, padded_b = _choose_tiling(B)

    # --- weights: tiny, prepared once at trace time, VMEM-resident in the kernel ---
    w1T = jnp.transpose(w1).astype(jnp.bfloat16)                        # (D, D) = W1^T
    b1_col = b1.reshape(D, 1).astype(jnp.float32)                       # (D, 1)
    w2_diff = (w2[:, 1] - w2[:, 0]).reshape(D, 1).astype(jnp.float32)   # (D, 1)
    b2_diff = (b2[1] - b2[0]).reshape(1, 1).astype(jnp.float32)         # SMEM scalar

    # --- activations: ONE wrapper pass = concat + bf16 cast + transpose + lane pad ---
    xT = jnp.concatenate([word_embeddings, hate_features], axis=1)      # (B, D)
    xT = jnp.transpose(xT.astype(jnp.bfloat16))                         # (D, B), lanes = batch
    if padded_b != B:
        xT = jnp.pad(xT, ((0, 0), (0, padded_b - B)))

    outT = pl.pallas_call(
        _head_kernel,
        out_shape=jax.ShapeDtypeStruct((2, padded_b), jnp.float32),
        grid=(padded_b // tile_b,),
        in_specs=[
            pl.BlockSpec((D, tile_b), lambda i: (0, i)),        # xT tile (lane-dense)
            pl.BlockSpec((D, D), lambda i: (0, 0)),             # W1^T, resident
            pl.BlockSpec((D, 1), lambda i: (0, 0)),             # b1 column, resident
            pl.BlockSpec((D, 1), lambda i: (0, 0)),             # w2 diff column, resident
            pl.BlockSpec(memory_space=pltpu.MemorySpace.SMEM),  # b2 diff scalar
        ],
        out_specs=pl.BlockSpec((2, tile_b), lambda i: (0, i)),  # lane-dense store
        compiler_params=pltpu.CompilerParams(
            dimension_semantics=("parallel",)),
    )(xT, w1T, b1_col, w2_diff, b2_diff)

    # (2, padded_b) -> (B, 2): tiny transpose back in the wrapper.
    return jnp.transpose(outT[:, :B])


def _kaiming_uniform(key, fan_in, shape):
    # torch.nn.init.kaiming_uniform_(w, nonlinearity='relu'): bound = sqrt(6 / fan_in)
    bound = jnp.sqrt(6.0 / fan_in)
    return jax.random.uniform(key, shape, jnp.float32, -bound, bound)


def _linear_bias(key, fan_in, shape):
    # torch default Linear bias init: U(-1/sqrt(fan_in), 1/sqrt(fan_in))
    bound = 1.0 / jnp.sqrt(float(fan_in))
    return jax.random.uniform(key, shape, jnp.float32, -bound, bound)


if __name__ == "__main__":
    # Small, shape-consistent configuration:
    #   transformer output dim = 32, hate_output = 8  ->  input = 40, output = 2
    B = 4
    T_OUT = 32
    HATE_OUT = 8
    D = T_OUT + HATE_OUT
    C = 2

    key = jax.random.PRNGKey(0)
    k_we, k_hf, k_w1, k_b1, k_w2, k_b2 = jax.random.split(key, 6)

    # TODO(synk): the pretrained TransformerModel (tokenization + RoBERTa encoder) has
    # no Pallas equivalent; its pooled output is synthesized as a dense input.
    word_embeddings = jax.random.normal(k_we, (B, T_OUT), jnp.float32)
    hate_features = jax.random.normal(k_hf, (B, HATE_OUT), jnp.float32)

    # Parameters of the roberta-tagalog head (ll1: D->D, ll2: D->2), stored (in, out).
    w1 = _kaiming_uniform(k_w1, D, (D, D))
    b1 = _linear_bias(k_b1, D, (D,))
    w2 = _kaiming_uniform(k_w2, D, (D, C))
    b2 = _linear_bias(k_b2, D, (C,))

    out = base_model_head(word_embeddings, hate_features, w1, b1, w2, b2)
    out = jax.block_until_ready(out)

    # Sanity: shape and rows summing to 1 (p0 = 1 - p1 exactly).
    assert out.shape == (B, C)
    assert jnp.allclose(jnp.sum(out, axis=1), 1.0, atol=1e-5)

    # Matched-precision JAX reference (bf16 matmul operands, f32 accumulation,
    # softmax folded to sigmoid of the logit difference).
    cdt = jnp.bfloat16
    x = jnp.concatenate([word_embeddings, hate_features], axis=1)
    h_ref = jnp.tanh(
        jnp.dot(x.astype(cdt), w1.astype(cdt), preferred_element_type=jnp.float32)
        + b1[None, :])
    d_ref = jnp.sum(h_ref * (w2[:, 1] - w2[:, 0])[None, :],
                    axis=1, keepdims=True) + (b2[1] - b2[0])
    p1_ref = 1.0 / (1.0 + jnp.exp(-d_ref))
    ref_matched = jnp.concatenate([1.0 - p1_ref, p1_ref], axis=1)
    assert jnp.allclose(out, ref_matched, atol=1e-4)

    # Full-precision softmax reference of the original head (loose tol for bf16 matmul).
    combined = jnp.concatenate([word_embeddings, hate_features], axis=1)
    ref_f32 = jax.nn.softmax(jnp.tanh(combined @ w1 + b1) @ w2 + b2, axis=1)
    assert jnp.allclose(out, ref_f32, atol=5e-2)

    print("KERNEL_OK")
</pallas_src>

<mosaic_0001>
module attributes {stable_mosaic.version = 11 : i64} {
  func.func @_head_kernel(%arg0: i32, %arg1: memref<40x128xbf16, #tpu.memory_space<vmem>>, %arg2: memref<40x40xbf16, #tpu.memory_space<vmem>>, %arg3: memref<40x1xf32, #tpu.memory_space<vmem>>, %arg4: memref<40x1xf32, #tpu.memory_space<vmem>>, %arg5: memref<1x1xf32, #tpu.memory_space<smem>>, %arg6: memref<2x128xf32, #tpu.memory_space<vmem>>) attributes {dimension_semantics = [#tpu.dimension_semantics<parallel>], iteration_bounds = array<i64: 1>, scalar_prefetch = 0 : i64, scratch_operands = 0 : i64, tpu.core_type = #tpu.core_type<tc>, window_params = [{transform_indices = @transform_0, window_bounds = array<i64: 40, 128>}, {pipeline_mode = #tpu.pipeline_mode<synchronous>, transform_indices = @transform_1, window_bounds = array<i64: 40, 40>}, {pipeline_mode = #tpu.pipeline_mode<synchronous>, transform_indices = @transform_2, window_bounds = array<i64: 40, 1>}, {pipeline_mode = #tpu.pipeline_mode<synchronous>, transform_indices = @transform_3, window_bounds = array<i64: 40, 1>}, {transform_indices = @transform_4, window_bounds = array<i64: 1, 1>}, {transform_indices = @transform_5, window_bounds = array<i64: 2, 128>}]} {
    %c0 = arith.constant 0 : index
    %c0_0 = arith.constant 0 : index
    %0 = vector.load %arg2[%c0, %c0_0] : memref<40x40xbf16, #tpu.memory_space<vmem>>, vector<40x40xbf16>
    %c0_1 = arith.constant 0 : index
    %c0_2 = arith.constant 0 : index
    %1 = vector.load %arg1[%c0_1, %c0_2] : memref<40x128xbf16, #tpu.memory_space<vmem>>, vector<40x128xbf16>
    %cst = arith.constant dense<0.000000e+00> : vector<40x128xf32>
    %2 = tpu.matmul %0, %1, %cst {dimension_numbers = #tpu.dot_dimension_numbers<[1], [0], [0], [1], [0, 0, 1, 1], [], []>} : vector<40x40xbf16>, vector<40x128xbf16>, vector<40x128xf32> -> vector<40x128xf32>
    %c0_3 = arith.constant 0 : index
    %c0_4 = arith.constant 0 : index
    %3 = vector.load %arg3[%c0_3, %c0_4] : memref<40x1xf32, #tpu.memory_space<vmem>>, vector<40x1xf32>
    %4 = vector.broadcast %3 : vector<40x1xf32> to vector<40x128xf32>
    %5 = arith.addf %2, %4 : vector<40x128xf32>
    %6 = math.tanh %5 : vector<40x128xf32>
    %c0_5 = arith.constant 0 : index
    %c0_6 = arith.constant 0 : index
    %7 = vector.load %arg4[%c0_5, %c0_6] : memref<40x1xf32, #tpu.memory_space<vmem>>, vector<40x1xf32>
    %8 = vector.broadcast %7 : vector<40x1xf32> to vector<40x128xf32>
    %9 = arith.mulf %6, %8 : vector<40x128xf32>
    %cst_7 = arith.constant dense<0.000000e+00> : vector<128xf32>
    %10 = vector.multi_reduction <add>, %9, %cst_7 [0] : vector<40x128xf32> to vector<128xf32>
    %11 = vector.shape_cast %10 : vector<128xf32> to vector<1x128xf32>
    %c0_8 = arith.constant 0 : index
    %c0_9 = arith.constant 0 : index
    %12 = memref.load %arg5[%c0_8, %c0_9] : memref<1x1xf32, #tpu.memory_space<smem>>
    %13 = vector.broadcast %12 : f32 to vector<1x128xf32>
    %14 = arith.addf %11, %13 : vector<1x128xf32>
    %cst_10 = arith.constant 0.000000e+00 : f32
    %15 = vector.broadcast %cst_10 : f32 to vector<1x128xf32>
    %16 = arith.subf %15, %14 : vector<1x128xf32>
    %17 = math.exp %16 : vector<1x128xf32>
    %cst_11 = arith.constant 1.000000e+00 : f32
    %18 = vector.broadcast %cst_11 : f32 to vector<1x128xf32>
    %19 = arith.addf %18, %17 : vector<1x128xf32>
    %cst_12 = arith.constant 1.000000e+00 : f32
    %20 = vector.broadcast %cst_12 : f32 to vector<1x128xf32>
    %21 = arith.divf %20, %19 : vector<1x128xf32>
    %cst_13 = arith.constant 1.000000e+00 : f32
    %22 = vector.broadcast %cst_13 : f32 to vector<1x128xf32>
    %23 = arith.subf %22, %21 : vector<1x128xf32>
    %24 = tpu.iota {dimensions = array<i32: 0>} : vector<2x128xi32>
    %c0_i32 = arith.constant 0 : i32
    %25 = vector.broadcast %c0_i32 : i32 to vector<2x128xi32>
    %26 = arith.cmpi eq, %24, %25 : vector<2x128xi32>
    %27 = vector.shape_cast %23 : vector<1x128xf32> to vector<1x128xf32>
    %28 = vector.broadcast %27 : vector<1x128xf32> to vector<2x128xf32>
    %29 = vector.shape_cast %21 : vector<1x128xf32> to vector<1x128xf32>
    %30 = vector.broadcast %29 : vector<1x128xf32> to vector<2x128xf32>
    %31 = arith.select %26, %28, %30 : vector<2x128xi1>, vector<2x128xf32>
    %c0_14 = arith.constant 0 : index
    %c0_15 = arith.constant 0 : index
    %32 = vector.load %arg6[%c0_14, %c0_15] : memref<2x128xf32, #tpu.memory_space<vmem>>, vector<2x128xf32>
    tpu.vector_store %arg6[%c0_14, %c0_15], %31 {strides = array<i32>} : memref<2x128xf32, #tpu.memory_space<vmem>>, vector<2x128xf32>,
    return
  }
  func.func @transform_0(%arg0: i32) -> (i32, i32) {
    %c0_i32 = arith.constant 0 : i32
    %c0_i32_0 = arith.constant 0 : i32
    return %c0_i32, %arg0 : i32, i32
  }
  func.func @transform_1(%arg0: i32) -> (i32, i32) {
    %c0_i32 = arith.constant 0 : i32
    %c0_i32_0 = arith.constant 0 : i32
    %c0_i32_1 = arith.constant 0 : i32
    return %c0_i32, %c0_i32_0 : i32, i32
  }
  func.func @transform_2(%arg0: i32) -> (i32, i32) {
    %c0_i32 = arith.constant 0 : i32
    %c0_i32_0 = arith.constant 0 : i32
    %c0_i32_1 = arith.constant 0 : i32
    return %c0_i32, %c0_i32_0 : i32, i32
  }
  func.func @transform_3(%arg0: i32) -> (i32, i32) {
    %c0_i32 = arith.constant 0 : i32
    %c0_i32_0 = arith.constant 0 : i32
    %c0_i32_1 = arith.constant 0 : i32
    return %c0_i32, %c0_i32_0 : i32, i32
  }
  func.func @transform_4(%arg0: i32) -> (i32, i32) {
    %c0_i32 = arith.constant 0 : i32
    %c0_i32_0 = arith.constant 0 : i32
    %c0_i32_1 = arith.constant 0 : i32
    return %c0_i32, %c0_i32_0 : i32, i32
  }
  func.func @transform_5(%arg0: i32) -> (i32, i32) {
    %c0_i32 = arith.constant 0 : i32
    %c0_i32_0 = arith.constant 0 : i32
    return %c0_i32, %arg0 : i32, i32
  }
}

</mosaic_0001>

<llo_original>
// kernel: tpu_custom_call.1
$region0: #{tpu_custom_call.1}
  #allocation0 [shape = 'u32[]', space=smem, size = 0x4, offset = 0x4, fixed_abs, tag = 'smem constant byte address 0x4 - core index']
  #allocation1 [shape = 'u32[144,128]{1,0:T(1,128)}', space=vmem, size = 0x12000, scoped, tag = 'internal scratch']
  #allocation2 [shape = 'f32[1,1]{1,0:T(1,128)S(6)}', space=smem, size = 0x200, scoped, tag = 'scoped memory for tpu_custom_call.1']
  %s0 = inlined_call_operand.vmem [shape: bf16[40,128], index: 0, kind: input, shape index: {}]
  %s1 = inlined_call_operand.vmem [shape: bf16[40,40], index: 1, kind: input, shape index: {}]
  %s2 = inlined_call_operand.vmem [shape: f32[40,1], index: 2, kind: input, shape index: {}]
  %s3 = inlined_call_operand.vmem [shape: f32[40,1], index: 3, kind: input, shape index: {}]
  %s4 = inlined_call_operand.<no memory space> [shape: f32[1,1], index: 4, kind: input, shape index: {}]
  %s5 = inlined_call_operand.hbm [shape: f32[2,128], index: 5, kind: output, shape index: {}]
  %s6 = sld [smem:[#allocation0]]
  $region30: #{tpu_custom_call.1} parent=0
    _
  %s8 = ssub.s32 1, %s6
  %s9 = scalar_select 0, %s8, %s6
  %10 = sst [smem:[#allocation2]] %s4
  $region1: #{tpu_custom_call.1} parent=0
    #allocation3 [shape = 'u8[1024]{0}', space=vmem, size = 0x400, scoped, tag = 'output window, operand 0, single buffered']
    #allocation4 [shape = 's32[1]{0}', space=sflag, size = 0x4, scoped, tag = 'scoped memory for tpu_custom_call.1']
    %11 = vsyncpa [#allocation4], 0
    // Predicated region
    $region2: #{tpu_custom_call.1} parent=1 // pred_check
      _
    $region3: #{tpu_custom_call.1} parent=1 // pred_check_branch
      %13 = sbr.rel (0) target = $region5
    $region4: #{tpu_custom_call.1} parent=1 // pred_region
      _
    $region5: #{tpu_custom_call.1} parent=1 // pred_fallthru
      _
    // Predicated region
    $region6: #{tpu_custom_call.1} parent=1 // pred_check
      _
    $region7: #{tpu_custom_call.1} parent=1 // pred_check_branch
      %15 = sbr.rel (0) target = $region9
    $region8: #{tpu_custom_call.1} parent=1 // pred_region
      _
    $region9: #{tpu_custom_call.1} parent=1 // pred_fallthru
      _
    // Predicated region
    $region10: #{tpu_custom_call.1} parent=1 // pred_check
      _
    $region11: #{tpu_custom_call.1} parent=1 // pred_check_branch
      %17 = sbr.rel (0) target = $region13
    $region12: #{tpu_custom_call.1} parent=1 // pred_region
      _
    $region13: #{tpu_custom_call.1} parent=1 // pred_fallthru
      _
    // Predicated region
    $region14: #{tpu_custom_call.1} parent=1 // pred_check
      _
    $region15: #{tpu_custom_call.1} parent=1 // pred_check_branch
      %19 = sbr.rel (0) target = $region17
    $region16: #{tpu_custom_call.1} parent=1 // pred_region
      _
    $region17: #{tpu_custom_call.1} parent=1 // pred_fallthru
      _
    // Predicated region
    $region18: #{tpu_custom_call.1} parent=1 // pred_check
      _
    $region19: #{tpu_custom_call.1} parent=1 // pred_check_branch
      %21 = sbr.rel (0) target = $region21
    $region20: #{tpu_custom_call.1} parent=1 // pred_region
      _
    $region21: #{tpu_custom_call.1} parent=1 // pred_fallthru
      _
    %v23 = vld [vmem:[%s1] sm:$0xf]
    %v24 = vld [vmem:[%s1 + $0x4] sm:$0xf]
    %v25 = vld [vmem:[%s1 + $0x8] sm:$0xf]
    %v26 = vld [vmem:[%s1 + $0xc] sm:$0xf]
    %v27 = vld [vmem:[%s1 + $0x10] sm:$0xf]
    %v28 = vld [vmem:[%s0] sm:$0xf]
    %v29 = vld [vmem:[%s0 + $0x4] sm:$0xf]
    %v30 = vld [vmem:[%s0 + $0x8] sm:$0xf]
    %v31 = vld [vmem:[%s0 + $0xc] sm:$0xf]
    %v32 = vld [vmem:[%s0 + $0x10] sm:$0xf]
    %v33 = vld [vmem:[%s2] sm:$0xff]
    %v34 = vld [vmem:[%s2 + $0x8] sm:$0xff]
    %v35 = vld [vmem:[%s2 + $0x10] sm:$0xff]
    %v36 = vld [vmem:[%s2 + $0x18] sm:$0xff]
    %v37 = vld [vmem:[%s2 + $0x20] sm:$0xff]
    %39 = vset.pattern.permute.xlu0 0
    %40 = vperm.xlu0 %39, %v33
    %v41 = vpop.permute.xlu0 %40
    %44 = vset.pattern.permute.xlu0 0
    %45 = vperm.xlu0 %44, %v34
    %v46 = vpop.permute.xlu0 %45
    %49 = vset.pattern.permute.xlu0 0
    %50 = vperm.xlu0 %49, %v35
    %v51 = vpop.permute.xlu0 %50
    %54 = vset.pattern.permute.xlu0 0
    %55 = vperm.xlu0 %54, %v36
    %v56 = vpop.permute.xlu0 %55
    %59 = vset.pattern.permute.xlu0 0
    %60 = vperm.xlu0 %59, %v37
    %v61 = vpop.permute.xlu0 %60
    %v68 = vunpack.c.l.b16 %v23
    %v69 = vunpack.c.l.b16 %v24
    %v70 = vunpack.c.l.b16 %v25
    %v71 = vunpack.c.l.b16 %v26
    %v72 = vunpack.c.l.b16 %v27
    %v73 = vpack.c.b16 %v69, %v68
    %v74 = vpack.c.b16 %v71, %v70
    %v75 = vpack.c.b16 %v72, %v72
    %v81 = vunpack.c.l.b16 %v28
    %v82 = vunpack.c.l.b16 %v29
    %v83 = vunpack.c.l.b16 %v30
    %v84 = vunpack.c.l.b16 %v31
    %v85 = vunpack.c.l.b16 %v32
    %v86 = vpack.c.b16 %v82, %v81
    %v87 = vpack.c.b16 %v84, %v83
    %v88 = vpack.c.b16 %v85, %v85
    %vm91 = vcmask 326656
    %v93 = vsel %vm91, %v73, 0
    %v96 = vsel %vm91, %v74, 0
    %v99 = vsel %vm91, %v75, 0
    %vm101 = vcmask 1043456
    %v103 = vsel %vm101, %v88, 0
    %105 = vmatprep.subr.bf16.mxu0 0
    %106 = vmatpush1.bf16.msra.mxu0 %v86
    %107 = vmatprep.subr.bf16.mxu0 0
    %108 = vmatpush1.bf16.msra.mxu0 %v87
    %109 = vmatprep.subr.bf16.mxu0 0
    %110 = vmatpush1.bf16.msra.mxu0 %v103
    %111 = vmatprep.subr.bf16.mxu0 0
    %112 = vmatpush1.bf16.msra.mxu0 0
    %113 = vmatprep.subr.bf16.mxu0 0
    %114 = vmatpush1.bf16.msra.mxu0 0
    %115 = vmatprep.subr.bf16.mxu0 0
    %116 = vmatpush1.bf16.msra.mxu0 0
    %117 = vmatprep.subr.bf16.mxu0 0
    %118 = vmatpush1.bf16.msra.mxu0 0
    %119 = vmatprep.subr.bf16.mxu0 0
    %120 = vmatpush1.bf16.msra.mxu0 0
    %121 = vmatprep.subr.bf16.mxu0 0
    %122 = vmatpush1.bf16.msra.mxu0 0
    %123 = vmatprep.subr.bf16.mxu0 0
    %124 = vmatpush1.bf16.msra.mxu0 0
    %125 = vmatprep.subr.bf16.mxu0 0
    %126 = vmatpush1.bf16.msra.mxu0 0
    %127 = vmatprep.subr.bf16.mxu0 0
    %128 = vmatpush1.bf16.msra.mxu0 0
    %129 = vmatprep.subr.bf16.mxu0 0
    %130 = vmatpush1.bf16.msra.mxu0 0
    %131 = vmatprep.subr.bf16.mxu0 0
    %132 = vmatpush1.bf16.msra.mxu0 0
    %133 = vmatprep.subr.bf16.mxu0 0
    %134 = vmatpush1.bf16.msra.mxu0 0
    %135 = vmatprep.subr.bf16.mxu0 0
    %136 = vmatpush1.bf16.msra.mxu0 0
    %137 = vmatprep.mubr.bf16.mxu0 0
    %138 = vmatmul.mubr.bf16.gmra.mrb[0].mxu0 %v93
    %v139 = vpop.f32.mrb[0].mxu0
    %v140 = vadd.f32 %v41, %v139
    %v141 = vpop.f32.mrb[0].mxu0
    %v142 = vpop.f32.mrb[0].mxu0
    %v143 = vadd.f32 %v46, %v142
    %v144 = vpop.f32.mrb[0].mxu0
    %145 = vmatprep.mubr.bf16.mxu0 0
    %146 = vmatmul.mubr.bf16.gmra.mrb[0].mxu0 %v96
    %v147 = vpop.f32.mrb[0].mxu0
    %v148 = vadd.f32 %v51, %v147
    %v149 = vpop.f32.mrb[0].mxu0
    %v150 = vpop.f32.mrb[0].mxu0
    %v151 = vadd.f32 %v56, %v150
    %v152 = vpop.f32.mrb[0].mxu0
    %153 = vmatprep.mubr.bf16.mxu0 0
    %154 = vmatmul.mubr.bf16.gmra.mrb[0].mxu0 %v99
    %v155 = vpop.f32.mrb[0].mxu0
    %v156 = vadd.f32 %v61, %v155
    %v157 = vpop.f32.mrb[0].mxu0
    %v158 = vpop.f32.mrb[0].mxu0
    %v159 = vpop.f32.mrb[0].mxu0
    %160 = vdwg.mxu0
    %v161 = vtanh.pop %v140
    %v162 = vtanh.pop %v143
    %v163 = vtanh.pop %v148
    %v164 = vtanh.pop %v151
    %v165 = vtanh.pop %v156
    %v166 = vld [vmem:[%s3] sm:$0xff]
    %v167 = vld [vmem:[%s3 + $0x8] sm:$0xff]
    %v168 = vld [vmem:[%s3 + $0x10] sm:$0xff]
    %v169 = vld [vmem:[%s3 + $0x18] sm:$0xff]
    %v170 = vld [vmem:[%s3 + $0x20] sm:$0xff]
    %172 = vset.pattern.permute.xlu0 0
    %173 = vperm.xlu0 %172, %v166
    %v174 = vpop.permute.xlu0 %173
    %177 = vset.pattern.permute.xlu0 0
    %178 = vperm.xlu0 %177, %v167
    %v179 = vpop.permute.xlu0 %178
    %182 = vset.pattern.permute.xlu0 0
    %183 = vperm.xlu0 %182, %v168
    %v184 = vpop.permute.xlu0 %183
    %187 = vset.pattern.permute.xlu0 0
    %188 = vperm.xlu0 %187, %v169
    %v189 = vpop.permute.xlu0 %188
    %192 = vset.pattern.permute.xlu0 0
    %193 = vperm.xlu0 %192, %v170
    %v194 = vpop.permute.xlu0 %193
    %v196 = vmul.f32 %v161, %v174
    %v197 = vmul.f32 %v162, %v179
    %v198 = vmul.f32 %v163, %v184
    %v199 = vmul.f32 %v164, %v189
    %v200 = vmul.f32 %v165, %v194
    %v201 = vadd.f32 %v196, %v197
    %v202 = vadd.f32 %v201, %v198
    %v203 = vadd.f32 %v202, %v199
    %v204 = vadd.f32 %v203, %v200
    %v205 = vrot.slane %v204, 4
    %v206 = vadd.f32 %v204, %v205
    %v207 = vrot.slane %v206, 2
    %v208 = vadd.f32 %v206, %v207
    %v209 = vrot.slane %v208, 1
    %v210 = vadd.f32 %v208, %v209
    %s211 = sld [smem:[#allocation2]]
    %v212 = vstv %s211
    %v213 = vadd.f32 %v210, %v212
    %v214 = vsub.f32 0.0, %v213
    %v215 = vmul.f32 %v214, 1.442695
    %v216 = vpow.pop %v215
    %v217 = vadd.f32 %v216, 1.0
    %v218 = vrcp.pop %v217
    %v219 = vmul.f32 1.0, %v218
    %v220 = vsub.f32 1.0, %v219
    %v221 = vlaneseq
    %v222 = vshrl.u32 %v221, 7
    %vm223 = vcmp.eq.s32.totalorder %v222, 0
    %v224 = vsel %vm223, %v220, %v219
    %225 = vst [vmem:[#allocation3] sm:$0x3] %v224
    // Predicated region
    $region22: #{tpu_custom_call.1} parent=1 // pred_check
      _
    $region23: #{tpu_custom_call.1} parent=1 // pred_check_branch
      %227 = sbr.rel (0) target = $region25
    $region24: #{tpu_custom_call.1} parent=1 // pred_region
      %s229 = ssub.s32 32, 32
      %230 = vsyncadd [#allocation4], %s229
      %s232 = sshll.u32 [#allocation3], 4
      %s233 = int_to_ptr.vmem [resolvable:$true] %s232
      %235 = dma.vmem_to_hbm [thread:$0]  %s233, 32, %s5, [#allocation4]
    $region25: #{tpu_custom_call.1} parent=1 // pred_fallthru
      _
    // Predicated region
    $region26: #{tpu_custom_call.1} parent=1 // pred_check
      _
    $region27: #{tpu_custom_call.1} parent=1 // pred_check_branch
      %237 = sbr.rel (0) target = $region29
    $region28: #{tpu_custom_call.1} parent=1 // pred_region
      %238 = dma.done [#allocation4], 32
    $region29: #{tpu_custom_call.1} parent=1 // pred_fallthru
      _
    %239 = vsyncpa [#allocation4], 1

</llo_original>
